<compile_context>
chip_gen: v5e
topology: v5e:2x2
jax: 0.10.0
libtpu: 0.0.40
codegen_flags: <defaults>
</compile_context>

<pallas_src>
import jax
import jax.numpy as jnp
from jax import lax
from jax.experimental import pallas as pl
from jax.experimental.pallas import tpu as pltpu


def _choose_nb(B, Lp, Lq, H, vmem_budget_bytes=20 * 1024 * 1024):
    """Pick batch-block size NB: fit VMEM budget, divide B, keep >= 2 grid steps."""
    # Double-buffered f32 input/output tiles + in-kernel f32 intermediates, per batch elem.
    per_b = 2 * (Lp * H + Lq * H + Lp * H) * 4 \
        + (2 * Lp * Lq + Lq * H + Lp * H) * 4
    nb = max(1, int(vmem_budget_bytes // max(per_b, 1)))
    nb = min(nb, B)
    if B >= 2:
        nb = max(1, min(nb, B // 2))   # at least 2 grid steps for v7x's 2 TensorCores
    while B % nb != 0:
        nb -= 1
    return max(nb, 1)


def ssingle_match_net(proj_p, proj_q, seq_len, w_trans, b_trans,
                      matmul_dtype=jnp.bfloat16, approx_recip=True):
    B, Lp, H = proj_p.shape
    _, Lq, _ = proj_q.shape

    nb = _choose_nb(B, Lp, Lq, H)
    grid = (B // nb,)

    # One-time transpose (and optional narrow cast) of the grid-invariant weight in XLA.
    w_t = jnp.transpose(w_trans).astype(matmul_dtype)        # [H, H] == W^T
    bias2d = b_trans.reshape(1, H).astype(jnp.float32)

    def kernel(seq_len_ref, p_ref, q_ref, wt_ref, bias_ref, o_ref):
        nb_, Lp_, H_ = p_ref.shape
        _, Lq_, _ = q_ref.shape
        step = pl.program_id(0)

        p = p_ref[...]                       # [nb, Lp, H] f32
        q = q_ref[...]                       # [nb, Lq, H] f32
        wm = wt_ref[...]                     # [H, H] = W^T (already matmul_dtype)
        bias = bias_ref[...]                 # [1, H] f32

        pm = p.astype(matmul_dtype)
        qm = q.astype(matmul_dtype)

        # trans_q = q @ W^T + b   (single 2D MXU dot over the (nb*Lq, H) slab)
        trans_q = (
            jnp.dot(qm.reshape(nb_ * Lq_, H_), wm,
                    preferred_element_type=jnp.float32).reshape(nb_, Lq_, H_)
            + bias
        )                                                       # [nb, Lq, H] f32

        # att = p @ trans_q^T : contract over H directly, no explicit transpose.
        att = lax.dot_general(
            pm, trans_q.astype(matmul_dtype),
            dimension_numbers=(((2,), (2,)), ((0,), (0,))),
            preferred_element_type=jnp.float32)                 # [nb, Lp, Lq] f32

        # masked_softmax (multiplicative masking, two-step renorm — mirrors PyTorch).
        # Select the per-batch lengths into a tiny (nb,1,1) tile, then one vector compare.
        base = step * nb_
        bidx_s = lax.broadcasted_iota(jnp.int32, (nb_, 1, 1), 0)
        lens_b = jnp.zeros((nb_, 1, 1), jnp.int32)
        for i in range(nb_):                 # static, tiny unroll over (nb,1,1) selects
            lens_b = jnp.where(bidx_s == i, seq_len_ref[base + i], lens_b)
        col = lax.broadcasted_iota(jnp.int32, (nb_, Lp_, Lq_), 2)
        mask = (col < lens_b).astype(jnp.float32)               # [nb, Lp, Lq]

        masked = att * mask
        m = jnp.max(masked, axis=-1, keepdims=True)
        e = jnp.exp(masked - m)
        denom1 = jnp.sum(e, axis=-1, keepdims=True)
        if approx_recip:
            sm = e * pl.reciprocal(denom1, approx=True)
        else:
            sm = e / denom1
        res = sm * mask
        denom2 = jnp.sum(res, axis=-1, keepdims=True) + 1e-13
        if approx_recip:
            res = res * pl.reciprocal(denom2, approx=True)
        else:
            res = res / denom2

        # att_vec = att_norm @ proj_q   (batched contraction over Lq)
        att_vec = lax.dot_general(
            res.astype(matmul_dtype), qm,
            dimension_numbers=(((2,), (1,)), ((0,), (0,))),
            preferred_element_type=jnp.float32)                 # [nb, Lp, H] f32

        # output = relu(att_vec @ W^T + b)
        out = (
            jnp.dot(att_vec.astype(matmul_dtype).reshape(nb_ * Lp_, H_), wm,
                    preferred_element_type=jnp.float32).reshape(nb_, Lp_, H_)
            + bias
        )
        o_ref[...] = jnp.maximum(out, 0.0)

    grid_spec = pltpu.PrefetchScalarGridSpec(
        num_scalar_prefetch=1,               # seq_len -> SMEM
        grid=grid,
        in_specs=[
            pl.BlockSpec((nb, Lp, H), lambda s, sl: (s, 0, 0)),   # proj_p
            pl.BlockSpec((nb, Lq, H), lambda s, sl: (s, 0, 0)),   # proj_q
            pl.BlockSpec((H, H), lambda s, sl: (0, 0)),           # W^T (grid-invariant)
            pl.BlockSpec((1, H), lambda s, sl: (0, 0)),           # bias
        ],
        out_specs=pl.BlockSpec((nb, Lp, H), lambda s, sl: (s, 0, 0)),
    )

    # Advisory cost hint for XLA scheduling around the custom call.
    flops = 2 * B * (Lq * H * H + Lp * Lq * H + Lp * Lq * H + Lp * H * H)
    transcendentals = B * Lp * Lq
    bytes_accessed = 4 * (2 * B * Lp * H + B * Lq * H + H * H + H) + 4 * B
    cost = pl.CostEstimate(flops=flops, transcendentals=transcendentals,
                           bytes_accessed=bytes_accessed)

    # Explicit VMEM budget (stay well under v7x's 64 MiB physical per-TC VMEM).
    mm_itemsize = jnp.dtype(matmul_dtype).itemsize
    vmem_needed = (
        2 * nb * (Lp * H + Lq * H + Lp * H) * 4          # double-buffered in/out tiles
        + 2 * H * H * mm_itemsize + 2 * H * 4            # weight + bias (double-buffered)
        + nb * (2 * Lp * Lq + Lq * H + Lp * H) * 4       # f32 intermediates
    )
    vmem_limit = int(min(max(2 * vmem_needed, 32 * 1024 * 1024), 48 * 1024 * 1024))

    return pl.pallas_call(
        kernel,
        out_shape=jax.ShapeDtypeStruct((B, Lp, H), jnp.float32),
        grid_spec=grid_spec,
        cost_estimate=cost,
        compiler_params=pltpu.CompilerParams(
            dimension_semantics=("parallel",),
            vmem_limit_bytes=vmem_limit),
    )(seq_len, proj_p, proj_q, w_t, bias2d)


def _reference(proj_p, proj_q, seq_len, w_trans, b_trans):
    # Plain-JAX reference mirroring the PyTorch code (f32 throughout).
    trans_q = jnp.einsum("blh,oh->blo", proj_q, w_trans) + b_trans
    att = jnp.einsum("bph,bqh->bpq", proj_p, trans_q)
    cols = jnp.arange(proj_q.shape[1])[None, None, :]
    mask = (cols < seq_len[:, None, None]).astype(att.dtype)
    masked = att * mask
    sm = jax.nn.softmax(masked, axis=-1)
    res = sm * mask
    res = res / (jnp.sum(res, axis=-1, keepdims=True) + 1e-13)
    att_vec = jnp.einsum("bpq,bqh->bph", res, proj_q)
    out = jnp.einsum("bph,oh->bpo", att_vec, w_trans) + b_trans
    return jnp.maximum(out, 0.0)


if __name__ == "__main__":
    B, Lp, Lq, H = 2, 8, 8, 32

    key = jax.random.PRNGKey(0)
    kp, kq, kw, kb = jax.random.split(key, 4)
    proj_p = jax.random.normal(kp, (B, Lp, H), dtype=jnp.float32)
    proj_q = jax.random.normal(kq, (B, Lq, H), dtype=jnp.float32)
    w_trans = jax.random.normal(kw, (H, H), dtype=jnp.float32) * 0.1
    b_trans = jax.random.normal(kb, (H,), dtype=jnp.float32) * 0.1
    seq_len = jnp.array([5, 8], dtype=jnp.int32)

    ref = _reference(proj_p, proj_q, seq_len, w_trans, b_trans)

    # 1) Strict semantic check: f32 MXU operands, exact divides -> must match reference.
    out_f32 = ssingle_match_net(proj_p, proj_q, seq_len, w_trans, b_trans,
                                matmul_dtype=jnp.float32, approx_recip=False)
    out_f32 = jax.block_until_ready(out_f32)
    assert out_f32.shape == (B, Lp, H)
    assert jnp.allclose(out_f32, ref, atol=1e-5, rtol=1e-5)

    # 2) Performance configuration (bf16 MXU operands + EUP approx reciprocal);
    #    bf16 operands loosen agreement with the f32 reference -> looser tolerance.
    out_fast = ssingle_match_net(proj_p, proj_q, seq_len, w_trans, b_trans,
                                 matmul_dtype=jnp.bfloat16, approx_recip=True)
    out_fast = jax.block_until_ready(out_fast)
    assert out_fast.shape == (B, Lp, H)
    assert jnp.allclose(out_fast, ref, atol=6e-2, rtol=6e-2)

    print("KERNEL_OK")
</pallas_src>

<mosaic_0001>
module attributes {stable_mosaic.version = 11 : i64} {
  func.func @kernel(%arg0: i32, %arg1: memref<2xi32, #tpu.memory_space<smem>>, %arg2: memref<1x8x32xf32, #tpu.memory_space<vmem>>, %arg3: memref<1x8x32xf32, #tpu.memory_space<vmem>>, %arg4: memref<32x32xf32, #tpu.memory_space<vmem>>, %arg5: memref<1x32xf32, #tpu.memory_space<vmem>>, %arg6: memref<1x8x32xf32, #tpu.memory_space<vmem>>) attributes {dimension_semantics = [#tpu.dimension_semantics<parallel>], iteration_bounds = array<i64: 2>, scalar_prefetch = 1 : i64, scratch_operands = 0 : i64, tpu.core_type = #tpu.core_type<tc>, window_params = [{transform_indices = @transform_0, window_bounds = array<i64: 1, 8, 32>}, {transform_indices = @transform_1, window_bounds = array<i64: 1, 8, 32>}, {pipeline_mode = #tpu.pipeline_mode<synchronous>, transform_indices = @transform_2, window_bounds = array<i64: 32, 32>}, {pipeline_mode = #tpu.pipeline_mode<synchronous>, transform_indices = @transform_3, window_bounds = array<i64: 1, 32>}, {transform_indices = @transform_4, window_bounds = array<i64: 1, 8, 32>}]} {
    %c0 = arith.constant 0 : index
    %c0_0 = arith.constant 0 : index
    %c0_1 = arith.constant 0 : index
    %0 = vector.load %arg2[%c0, %c0_0, %c0_1] : memref<1x8x32xf32, #tpu.memory_space<vmem>>, vector<1x8x32xf32>
    %c0_2 = arith.constant 0 : index
    %c0_3 = arith.constant 0 : index
    %c0_4 = arith.constant 0 : index
    %1 = vector.load %arg3[%c0_2, %c0_3, %c0_4] : memref<1x8x32xf32, #tpu.memory_space<vmem>>, vector<1x8x32xf32>
    %c0_5 = arith.constant 0 : index
    %c0_6 = arith.constant 0 : index
    %2 = vector.load %arg4[%c0_5, %c0_6] : memref<32x32xf32, #tpu.memory_space<vmem>>, vector<32x32xf32>
    %c0_7 = arith.constant 0 : index
    %c0_8 = arith.constant 0 : index
    %3 = vector.load %arg5[%c0_7, %c0_8] : memref<1x32xf32, #tpu.memory_space<vmem>>, vector<1x32xf32>
    %4 = vector.shape_cast %1 : vector<1x8x32xf32> to vector<8x32xf32>
    %cst = arith.constant dense<0.000000e+00> : vector<8x32xf32>
    %5 = tpu.matmul %4, %2, %cst {dimension_numbers = #tpu.dot_dimension_numbers<[1], [0], [0], [1], [0, 0, 1, 1], [], []>} : vector<8x32xf32>, vector<32x32xf32>, vector<8x32xf32> -> vector<8x32xf32>
    %6 = vector.shape_cast %5 : vector<8x32xf32> to vector<1x8x32xf32>
    %7 = vector.shape_cast %3 : vector<1x32xf32> to vector<1x1x32xf32>
    %8 = vector.broadcast %7 : vector<1x1x32xf32> to vector<1x8x32xf32>
    %9 = arith.addf %6, %8 : vector<1x8x32xf32>
    %cst_9 = arith.constant dense<0.000000e+00> : vector<1x8x8xf32>
    %10 = tpu.matmul %0, %9, %cst_9 {dimension_numbers = #tpu.dot_dimension_numbers<[2], [2], [1], [1], [0, 0, 0, 1, 1, 1], [0], [0]>} : vector<1x8x32xf32>, vector<1x8x32xf32>, vector<1x8x8xf32> -> vector<1x8x8xf32>
    %c1_i32 = arith.constant 1 : i32
    %11 = arith.muli %arg0, %c1_i32 : i32
    %12 = tpu.iota {dimensions = array<i32: 0>} : vector<1x1x1xi32>
    %c0_i32 = arith.constant 0 : i32
    %13 = vector.broadcast %c0_i32 : i32 to vector<1x1x1xi32>
    %c0_i32_10 = arith.constant 0 : i32
    %14 = vector.broadcast %c0_i32_10 : i32 to vector<1x1x1xi32>
    %15 = arith.cmpi eq, %12, %14 : vector<1x1x1xi32>
    %c0_i32_11 = arith.constant 0 : i32
    %16 = arith.addi %11, %c0_i32_11 : i32
    %17 = arith.index_cast %16 : i32 to index
    %18 = memref.load %arg1[%17] : memref<2xi32, #tpu.memory_space<smem>>
    %19 = vector.broadcast %18 : i32 to vector<1x1x1xi32>
    %20 = arith.select %15, %19, %13 : vector<1x1x1xi1>, vector<1x1x1xi32>
    %21 = tpu.iota {dimensions = array<i32: 2>} : vector<1x8x8xi32>
    %22 = vector.broadcast %20 : vector<1x1x1xi32> to vector<1x8x8xi32>
    %23 = arith.cmpi slt, %21, %22 : vector<1x8x8xi32>
    %24 = arith.extui %23 : vector<1x8x8xi1> to vector<1x8x8xi32>
    %25 = arith.sitofp %24 : vector<1x8x8xi32> to vector<1x8x8xf32>
    %26 = arith.mulf %10, %25 : vector<1x8x8xf32>
    %cst_12 = arith.constant dense<0xFF800000> : vector<1x8xf32>
    %27 = vector.multi_reduction <maximumf>, %26, %cst_12 [2] : vector<1x8x8xf32> to vector<1x8xf32>
    %28 = vector.shape_cast %27 : vector<1x8xf32> to vector<1x8x1xf32>
    %29 = vector.broadcast %28 : vector<1x8x1xf32> to vector<1x8x8xf32>
    %30 = arith.subf %26, %29 : vector<1x8x8xf32>
    %31 = math.exp %30 : vector<1x8x8xf32>
    %cst_13 = arith.constant dense<0.000000e+00> : vector<1x8xf32>
    %32 = vector.multi_reduction <add>, %31, %cst_13 [2] : vector<1x8x8xf32> to vector<1x8xf32>
    %33 = vector.shape_cast %32 : vector<1x8xf32> to vector<1x8x1xf32>
    %34 = vector.broadcast %33 : vector<1x8x1xf32> to vector<1x8x8xf32>
    %35 = arith.divf %31, %34 : vector<1x8x8xf32>
    %36 = arith.mulf %35, %25 : vector<1x8x8xf32>
    %cst_14 = arith.constant dense<0.000000e+00> : vector<1x8xf32>
    %37 = vector.multi_reduction <add>, %36, %cst_14 [2] : vector<1x8x8xf32> to vector<1x8xf32>
    %38 = vector.shape_cast %37 : vector<1x8xf32> to vector<1x8x1xf32>
    %cst_15 = arith.constant 9.99999982E-14 : f32
    %39 = vector.broadcast %cst_15 : f32 to vector<1x8x1xf32>
    %40 = arith.addf %38, %39 : vector<1x8x1xf32>
    %41 = vector.broadcast %40 : vector<1x8x1xf32> to vector<1x8x8xf32>
    %42 = arith.divf %36, %41 : vector<1x8x8xf32>
    %cst_16 = arith.constant dense<0.000000e+00> : vector<1x8x32xf32>
    %43 = tpu.matmul %42, %1, %cst_16 {dimension_numbers = #tpu.dot_dimension_numbers<[2], [1], [1], [2], [0, 0, 0, 1, 1, 2], [0], [0]>} : vector<1x8x8xf32>, vector<1x8x32xf32>, vector<1x8x32xf32> -> vector<1x8x32xf32>
    %44 = vector.shape_cast %43 : vector<1x8x32xf32> to vector<8x32xf32>
    %cst_17 = arith.constant dense<0.000000e+00> : vector<8x32xf32>
    %45 = tpu.matmul %44, %2, %cst_17 {dimension_numbers = #tpu.dot_dimension_numbers<[1], [0], [0], [1], [0, 0, 1, 1], [], []>} : vector<8x32xf32>, vector<32x32xf32>, vector<8x32xf32> -> vector<8x32xf32>
    %46 = vector.shape_cast %45 : vector<8x32xf32> to vector<1x8x32xf32>
    %47 = vector.shape_cast %3 : vector<1x32xf32> to vector<1x1x32xf32>
    %48 = vector.broadcast %47 : vector<1x1x32xf32> to vector<1x8x32xf32>
    %49 = arith.addf %46, %48 : vector<1x8x32xf32>
    %cst_18 = arith.constant 0.000000e+00 : f32
    %50 = vector.broadcast %cst_18 : f32 to vector<1x8x32xf32>
    %51 = arith.maximumf %49, %50 : vector<1x8x32xf32>
    %c0_19 = arith.constant 0 : index
    %c0_20 = arith.constant 0 : index
    %c0_21 = arith.constant 0 : index
    %52 = vector.load %arg6[%c0_19, %c0_20, %c0_21] : memref<1x8x32xf32, #tpu.memory_space<vmem>>, vector<1x8x32xf32>
    tpu.vector_store %arg6[%c0_19, %c0_20, %c0_21], %51 {strides = array<i32>} : memref<1x8x32xf32, #tpu.memory_space<vmem>>, vector<1x8x32xf32>,
    return
  }
  func.func @transform_0(%arg0: i32, %arg1: memref<2xi32, #tpu.memory_space<smem>>) -> (i32, i32, i32) {
    %c0_i32 = arith.constant 0 : i32
    %c0_i32_0 = arith.constant 0 : i32
    %c0_i32_1 = arith.constant 0 : i32
    return %arg0, %c0_i32, %c0_i32_0 : i32, i32, i32
  }
  func.func @transform_1(%arg0: i32, %arg1: memref<2xi32, #tpu.memory_space<smem>>) -> (i32, i32, i32) {
    %c0_i32 = arith.constant 0 : i32
    %c0_i32_0 = arith.constant 0 : i32
    %c0_i32_1 = arith.constant 0 : i32
    return %arg0, %c0_i32, %c0_i32_0 : i32, i32, i32
  }
  func.func @transform_2(%arg0: i32, %arg1: memref<2xi32, #tpu.memory_space<smem>>) -> (i32, i32) {
    %c0_i32 = arith.constant 0 : i32
    %c0_i32_0 = arith.constant 0 : i32
    %c0_i32_1 = arith.constant 0 : i32
    return %c0_i32, %c0_i32_0 : i32, i32
  }
  func.func @transform_3(%arg0: i32, %arg1: memref<2xi32, #tpu.memory_space<smem>>) -> (i32, i32) {
    %c0_i32 = arith.constant 0 : i32
    %c0_i32_0 = arith.constant 0 : i32
    %c0_i32_1 = arith.constant 0 : i32
    return %c0_i32, %c0_i32_0 : i32, i32
  }
  func.func @transform_4(%arg0: i32, %arg1: memref<2xi32, #tpu.memory_space<smem>>) -> (i32, i32, i32) {
    %c0_i32 = arith.constant 0 : i32
    %c0_i32_0 = arith.constant 0 : i32
    %c0_i32_1 = arith.constant 0 : i32
    return %arg0, %c0_i32, %c0_i32_0 : i32, i32, i32
  }
}

</mosaic_0001>

<llo_original>
// kernel: tpu_custom_call.1
$region0: #{tpu_custom_call.1}
  #allocation0 [shape = 'u32[]', space=smem, size = 0x4, offset = 0x4, fixed_abs, tag = 'smem constant byte address 0x4 - core index']
  #allocation1 [shape = 'u32[72,128]{1,0:T(1,128)}', space=vmem, size = 0x9000, scoped, tag = 'internal scratch']
  #allocation2 [shape = 's32[1]{0}', space=sflag, size = 0x4, scoped, tag = 'scoped memory for tpu_custom_call.1']
  #allocation3 [shape = 'u8[512]{0}', space=smem, size = 0x200, scoped, tag = 'prefetched SMEM operand 0']
  %s0 = inlined_call_operand.hbm [shape: s32[2], index: 0, kind: input, shape index: {}]
  %s1 = inlined_call_operand.hbm [shape: f32[2,8,32], index: 1, kind: input, shape index: {}]
  %s2 = inlined_call_operand.hbm [shape: f32[2,8,32], index: 2, kind: input, shape index: {}]
  %s3 = inlined_call_operand.hbm [shape: f32[32,32], index: 3, kind: input, shape index: {}]
  %s4 = inlined_call_operand.vmem [shape: f32[1,32], index: 4, kind: input, shape index: {}]
  %s5 = inlined_call_operand.hbm [shape: f32[2,8,32], index: 5, kind: output, shape index: {}]
  %s6 = sld [smem:[#allocation0]]
  $region61: #{tpu_custom_call.1} parent=0
    _
  %s8 = ssub.s32 1, %s6
  %s9 = scalar_select 0, %s8, %s6
  %s11 = sshll.u32 %s0, 4
  %s12 = int_to_ptr.hbm [resolvable:$true] %s11
  %14 = dma.hbm_to_smem %s12, 16, [#allocation3], [#allocation2]
  %16 = dma.done [#allocation2], 16
  %17 = sfence
  $region1: #{tpu_custom_call.1} parent=0
    #allocation4 [shape = 'u8[8192]{0}', space=vmem, size = 0x2000, scoped, tag = 'input window, operand 1']
    #allocation5 [shape = 's32[2]{0}', space=sflag, size = 0x8, scoped, tag = 'scoped memory for tpu_custom_call.1']
    #allocation6 [shape = 's32[2]{0}', space=sflag, size = 0x8, scoped, tag = 'scoped memory for tpu_custom_call.1']
    #allocation7 [shape = 'u8[8192]{0}', space=vmem, size = 0x2000, scoped, tag = 'input window, operand 2']
    #allocation8 [shape = 's32[2]{0}', space=sflag, size = 0x8, scoped, tag = 'scoped memory for tpu_custom_call.1']
    #allocation9 [shape = 'u8[16384]{0}', space=vmem, size = 0x4000, scoped, tag = 'input window, operand 3, single buffered']
    #allocation10 [shape = 'u8[8192]{0}', space=vmem, size = 0x2000, scoped, tag = 'output window, operand 0']
    %18 = vsyncpa [#allocation5], 0
    %s19 = scalar_lea.sflag [#allocation5], 1
    %20 = vsyncpa %s19, 0
    %21 = vsyncpa [#allocation8], 0
    %s22 = scalar_lea.sflag [#allocation8], 1
    %23 = vsyncpa %s22, 0
    %24 = vsyncpa [#allocation6], 0
    %s25 = scalar_lea.sflag [#allocation6], 1
    %26 = vsyncpa %s25, 0
    loop: start=0, step=1, limit=4
    $region2: #{tpu_custom_call.1} parent=1 // loop_pre_header
      _
    $region3: #{tpu_custom_call.1} parent=1 // loop_header
      %s28 = sphi 0, %s32
      %p29 = scmp.ge.s32.totalorder %s28, 4
      %s38 = sphi 0, %s40
      %s41 = sphi 0, %s38
      %s42 = sphi 0, %s41
      %s58 = sphi 0, %s42
      %s64 = sphi 0, %s66
      %s67 = sphi 0, %s64
      %s68 = sphi 0, %s67
      %s84 = sphi 0, %s68
      %s88 = sphi 0, %s88
      %s90 = sphi 0, %s88
      %s91 = sphi 0, %s90
      %s105 = sphi 0, %s91
      %s109 = sphi 0, %s109
      %s111 = sphi 0, %s109
      %s112 = sphi 0, %s111
      %s126 = sphi 0, %s112
      %s132 = sphi 0, %s134
      %s135 = sphi 0, %s132
      %s136 = sphi 0, %s135
      %s152 = sphi 0, %s136
    $region4: #{tpu_custom_call.1} parent=1 // loop_header_branch
      %31 = sbr.rel (%p29) target = $region8
    $region5: #{tpu_custom_call.1} parent=1 // loop_body
      %s33 = ssub.s32 %s28, 1
      %s34 = ssub.s32 %s28, 2
      %s35 = sadd.s32 %s28, 1
      %s36 = ssub.s32 %s28, %s35
      %p37 = scmp.eq.s32.totalorder %s36, 0
      %s39 = sadd.s32 %s38, 1
      %s40 = scalar_select %p37, %s38, %s39
      %p43 = pneg %p37
      %p44 = scmp.eq.s32.totalorder %s28, 1
      %p45 = por %p43, %p44
      %p46 = scmp.ne.s32.totalorder %s38, %s41
      %p47 = scmp.eq.s32.totalorder %s28, 0
      %p48 = por %p46, %p47
      %p49 = scmp.ne.s32.totalorder %s38, %s41
      %p50 = scmp.eq.s32.totalorder %s33, 1
      %p51 = por %p49, %p50
      %p52 = scmp.ne.s32.totalorder %s41, %s42
      %p53 = scmp.eq.s32.totalorder %s33, 0
      %p54 = por %p52, %p53
      %p55 = scmp.ne.s32.totalorder %s41, %s42
      %p56 = scmp.eq.s32.totalorder %s34, 1
      %p57 = por %p55, %p56
      %p59 = scmp.ne.s32.totalorder %s42, %s58
      %p60 = scmp.eq.s32.totalorder %s34, 0
      %p61 = por %p59, %p60
      %s62 = ssub.s32 %s28, %s35
      %p63 = scmp.eq.s32.totalorder %s62, 0
      %s65 = sadd.s32 %s64, 1
      %s66 = scalar_select %p63, %s64, %s65
      %p69 = pneg %p63
      %p70 = scmp.eq.s32.totalorder %s28, 1
      %p71 = por %p69, %p70
      %p72 = scmp.ne.s32.totalorder %s64, %s67
      %p73 = scmp.eq.s32.totalorder %s28, 0
      %p74 = por %p72, %p73
      %p75 = scmp.ne.s32.totalorder %s64, %s67
      %p76 = scmp.eq.s32.totalorder %s33, 1
      %p77 = por %p75, %p76
      %p78 = scmp.ne.s32.totalorder %s67, %s68
      %p79 = scmp.eq.s32.totalorder %s33, 0
      %p80 = por %p78, %p79
      %p81 = scmp.ne.s32.totalorder %s67, %s68
      %p82 = scmp.eq.s32.totalorder %s34, 1
      %p83 = por %p81, %p82
      %p85 = scmp.ne.s32.totalorder %s68, %s84
      %p86 = scmp.eq.s32.totalorder %s34, 0
      %p87 = por %p85, %p86
      %s89 = sadd.s32 %s88, 1
      %p92 = scmp.eq.s32.totalorder %s28, 1
      %p93 = scmp.ne.s32.totalorder %s88, %s90
      %p94 = scmp.eq.s32.totalorder %s28, 0
      %p95 = por %p93, %p94
      %p96 = scmp.ne.s32.totalorder %s88, %s90
      %p97 = scmp.eq.s32.totalorder %s33, 1
      %p98 = por %p96, %p97
      %p99 = scmp.ne.s32.totalorder %s90, %s91
      %p100 = scmp.eq.s32.totalorder %s33, 0
      %p101 = por %p99, %p100
      %p102 = scmp.ne.s32.totalorder %s90, %s91
      %p103 = scmp.eq.s32.totalorder %s34, 1
      %p104 = por %p102, %p103
      %p106 = scmp.ne.s32.totalorder %s91, %s105
      %p107 = scmp.eq.s32.totalorder %s34, 0
      %p108 = por %p106, %p107
      %s110 = sadd.s32 %s109, 1
      %p113 = scmp.eq.s32.totalorder %s28, 1
      %p114 = scmp.ne.s32.totalorder %s109, %s111
      %p115 = scmp.eq.s32.totalorder %s28, 0
      %p116 = por %p114, %p115
      %p117 = scmp.ne.s32.totalorder %s109, %s111
      %p118 = scmp.eq.s32.totalorder %s33, 1
      %p119 = por %p117, %p118
      %p120 = scmp.ne.s32.totalorder %s111, %s112
      %p121 = scmp.eq.s32.totalorder %s33, 0
      %p122 = por %p120, %p121
      %p123 = scmp.ne.s32.totalorder %s111, %s112
      %p124 = scmp.eq.s32.totalorder %s34, 1
      %p125 = por %p123, %p124
      %p127 = scmp.ne.s32.totalorder %s112, %s126
      %p128 = scmp.eq.s32.totalorder %s34, 0
      %p129 = por %p127, %p128
      %s130 = ssub.s32 %s28, %s35
      %p131 = scmp.eq.s32.totalorder %s130, 0
      %s133 = sadd.s32 %s132, 1
      %s134 = scalar_select %p131, %s132, %s133
      %p137 = pneg %p131
      %p138 = scmp.eq.s32.totalorder %s28, 1
      %p139 = por %p137, %p138
      %p140 = scmp.ne.s32.totalorder %s132, %s135
      %p141 = scmp.eq.s32.totalorder %s28, 0
      %p142 = por %p140, %p141
      %p143 = scmp.ne.s32.totalorder %s132, %s135
      %p144 = scmp.eq.s32.totalorder %s33, 1
      %p145 = por %p143, %p144
      %p146 = scmp.ne.s32.totalorder %s135, %s136
      %p147 = scmp.eq.s32.totalorder %s33, 0
      %p148 = por %p146, %p147
      %p149 = scmp.ne.s32.totalorder %s135, %s136
      %p150 = scmp.eq.s32.totalorder %s34, 1
      %p151 = por %p149, %p150
      %p153 = scmp.ne.s32.totalorder %s136, %s152
      %p154 = scmp.eq.s32.totalorder %s34, 0
      %p155 = por %p153, %p154
      %p156 = scmp.le.s32.totalorder 1, %s28
      %p157 = scmp.lt.s32.totalorder %s28, 3
      %p158 = pnand %p156, %p157
      %p159 = pneg %p158
      // Predicated region
      $region9: #{tpu_custom_call.1} parent=5 // pred_check
        _
      $region10: #{tpu_custom_call.1} parent=5 // pred_check_branch
        %161 = sbr.rel (%p158) target = $region12
      $region11: #{tpu_custom_call.1} parent=5 // pred_region
        %s162 = ssub.s32 %s28, 1
        // Predicated region
        $region13: #{tpu_custom_call.1} parent=11 // pred_check
          %p163 = pneg %p101
        $region14: #{tpu_custom_call.1} parent=11 // pred_check_branch
          %165 = sbr.rel (%p163) target = $region16
        $region15: #{tpu_custom_call.1} parent=11 // pred_region
          %167 = vsyncadd [#allocation8], 0
          %s168 = sshll.u32 %s3, 4
          %s169 = int_to_ptr.hbm [resolvable:$true] %s168
          %s170 = sshll.u32 [#allocation9], 4
          %s171 = int_to_ptr.vmem [resolvable:$true] %s170
          %176 = dma.hbm_to_vmem [thread:$0]  %s169, 512, %s171, [#allocation8], 128, 128, 8
        $region16: #{tpu_custom_call.1} parent=11 // pred_fallthru
          _
        // Predicated region
        $region17: #{tpu_custom_call.1} parent=11 // pred_check
          %p177 = pneg %p122
        $region18: #{tpu_custom_call.1} parent=11 // pred_check_branch
          %179 = sbr.rel (%p177) target = $region20
        $region19: #{tpu_custom_call.1} parent=11 // pred_region
          _
        $region20: #{tpu_custom_call.1} parent=11 // pred_fallthru
          _
      $region12: #{tpu_custom_call.1} parent=5 // pred_fallthru
        _
      %p180 = scmp.lt.s32.totalorder %s28, 2
      // Predicated region
      $region21: #{tpu_custom_call.1} parent=5 // pred_check
        %p181 = pneg %p180
      $region22: #{tpu_custom_call.1} parent=5 // pred_check_branch
        %183 = sbr.rel (%p181) target = $region24
      $region23: #{tpu_custom_call.1} parent=5 // pred_region
        // Predicated region
        $region25: #{tpu_custom_call.1} parent=23 // pred_check
          %p184 = pneg %p48
        $region26: #{tpu_custom_call.1} parent=23 // pred_check_branch
          %186 = sbr.rel (%p184) target = $region28
        $region27: #{tpu_custom_call.1} parent=23 // pred_region
          %s187 = sand.u32 %s38, 1
          %s188 = scalar_lea.sflag [#allocation5], %s187
          %s189 = sand.u32 %s38, 1
          %s190 = smul.addr %s189, 8
          %s191 = scalar_lea.vmem [#allocation4], %s190
          %193 = vsyncadd %s188, 0
          %s194 = smul.addr %s28, 8
          %s195 = scalar_lea.hbm %s1, %s194
          %s197 = sshll.u32 %s195, 4
          %s198 = int_to_ptr.hbm [resolvable:$true] %s197
          %s199 = sshll.u32 %s191, 4
          %s200 = int_to_ptr.vmem [resolvable:$true] %s199
          %202 = dma.hbm_to_vmem [thread:$0]  %s198, 128, %s200, %s188
        $region28: #{tpu_custom_call.1} parent=23 // pred_fallthru
          _
        // Predicated region
        $region29: #{tpu_custom_call.1} parent=23 // pred_check
          %p203 = pneg %p74
        $region30: #{tpu_custom_call.1} parent=23 // pred_check_branch
          %205 = sbr.rel (%p203) target = $region32
        $region31: #{tpu_custom_call.1} parent=23 // pred_region
          %s206 = sand.u32 %s28, 1
          %s207 = scalar_lea.sflag [#allocation8], %s206
          %s208 = sand.u32 %s64, 1
          %s209 = smul.addr %s208, 8
          %s210 = scalar_lea.vmem [#allocation7], %s209
          %212 = vsyncadd %s207, 0
          %s213 = smul.addr %s28, 8
          %s214 = scalar_lea.hbm %s2, %s213
          %s216 = sshll.u32 %s214, 4
          %s217 = int_to_ptr.hbm [resolvable:$true] %s216
          %s218 = sshll.u32 %s210, 4
          %s219 = int_to_ptr.vmem [resolvable:$true] %s218
          %221 = dma.hbm_to_vmem [thread:$0]  %s217, 128, %s219, %s207
        $region32: #{tpu_custom_call.1} parent=23 // pred_fallthru
          _
      $region24: #{tpu_custom_call.1} parent=5 // pred_fallthru
        _
      %p222 = scmp.le.s32.totalorder 1, %s28
      %p223 = scmp.lt.s32.totalorder %s28, 3
      %p224 = pnand %p222, %p223
      %p225 = pneg %p224
      // Predicated region
      $region33: #{tpu_custom_call.1} parent=5 // pred_check
        _
      $region34: #{tpu_custom_call.1} parent=5 // pred_check_branch
        %227 = sbr.rel (%p224) target = $region36
      $region35: #{tpu_custom_call.1} parent=5 // pred_region
        %s228 = ssub.s32 %s28, 1
        %s229 = sand.u32 %s41, 1
        %s230 = scalar_lea.sflag [#allocation5], %s229
        %s231 = sand.u32 %s41, 1
        %s232 = smul.addr %s231, 8
        %s233 = scalar_lea.vmem [#allocation4], %s232
        // Predicated region
        $region37: #{tpu_custom_call.1} parent=35 // pred_check
          %p234 = pneg %p54
        $region38: #{tpu_custom_call.1} parent=35 // pred_check_branch
          %236 = sbr.rel (%p234) target = $region40
        $region39: #{tpu_custom_call.1} parent=35 // pred_region
          %238 = dma.done %s230, 128
        $region40: #{tpu_custom_call.1} parent=35 // pred_fallthru
          _
        %s239 = sand.u32 %s33, 1
        %s240 = scalar_lea.sflag [#allocation8], %s239
        %s241 = sand.u32 %s67, 1
        %s242 = smul.addr %s241, 8
        %s243 = scalar_lea.vmem [#allocation7], %s242
        // Predicated region
        $region41: #{tpu_custom_call.1} parent=35 // pred_check
          %p244 = pneg %p80
        $region42: #{tpu_custom_call.1} parent=35 // pred_check_branch
          %246 = sbr.rel (%p244) target = $region44
        $region43: #{tpu_custom_call.1} parent=35 // pred_region
          %248 = dma.done %s240, 128
        $region44: #{tpu_custom_call.1} parent=35 // pred_fallthru
          _
        // Predicated region
        $region45: #{tpu_custom_call.1} parent=35 // pred_check
          %p249 = pneg %p101
        $region46: #{tpu_custom_call.1} parent=35 // pred_check_branch
          %251 = sbr.rel (%p249) target = $region48
        $region47: #{tpu_custom_call.1} parent=35 // pred_region
          %253 = dma.done [#allocation8], 512
        $region48: #{tpu_custom_call.1} parent=35 // pred_fallthru
          _
        %s254 = sand.u32 %s41, 1
        %s255 = scalar_lea.sflag [#allocation5], %s254
        %s256 = sand.u32 %s41, 1
        %s257 = smul.addr %s256, 8
        %s258 = scalar_lea.vmem [#allocation4], %s257
        %p259 = pneg %p54
        %p260 = pneg %p51
        %s261 = sand.u32 %s33, 1
        %s262 = scalar_lea.sflag [#allocation8], %s261
        %s263 = sand.u32 %s67, 1
        %s264 = smul.addr %s263, 8
        %s265 = scalar_lea.vmem [#allocation7], %s264
        %p266 = pneg %p80
        %p267 = pneg %p77
        %p268 = pneg %p101
        %p269 = pneg %p98
        %p270 = pneg %p122
        %p271 = pneg %p119
        %p272 = pneg %p148
        %p273 = pneg %p145
        %s274 = sand.u32 %s135, 1
        %s275 = scalar_lea.sflag [#allocation6], %s274
        %s276 = sand.u32 %s135, 1
        %s277 = smul.addr %s276, 8
        %s278 = scalar_lea.vmem [#allocation10], %s277
        %v279 = vld [vmem:[%s233] sm:$0xff]
        %v280 = vld [vmem:[%s243] sm:$0xff]
        %v281 = vld [vmem:[#allocation9] sm:$0xff]
        %v282 = vld [vmem:[#allocation9 + $0x8] sm:$0xff]
        %v283 = vld [vmem:[#allocation9 + $0x10] sm:$0xff]
        %v284 = vld [vmem:[#allocation9 + $0x18] sm:$0xff]
        %v285 = vld [vmem:[%s4] sm:$0x1]
        %vm286 = vcmask 261120
        %v288 = vsel %vm286, %v280, 0
        %290 = vmatpush.msra.mxu0 0.0
        %291 = vmatpush.msra.mxu0 0.0
        %292 = vmatpush.msra.mxu0 0.0
        %293 = vmatpush.msra.mxu0 0.0
        %294 = vmatpush.msra.mxu0 0.0
        %295 = vmatpush.msra.mxu0 0.0
        %296 = vmatpush.msra.mxu0 0.0
        %297 = vmatpush.msra.mxu0 0.0
        %298 = vmatpush.msra.mxu0 0.0
        %299 = vmatpush.msra.mxu0 0.0
        %300 = vmatpush.msra.mxu0 0.0
        %301 = vmatpush.msra.mxu0 0.0
        %302 = vmatpush.msra.mxu0 %v284
        %303 = vmatpush.msra.mxu0 %v283
        %304 = vmatpush.msra.mxu0 %v282
        %305 = vmatpush.msra.mxu0 %v281
        %306 = vmatmul.f32.gmra.mxu0 %v288
        %v307 = vpop.f32.mrf.mxu0
        %v308 = vadd.f32 0.0, %v307
        %309 = vdwg.mxu0
        %v311 = vperm.slane %v285, 0
        %v313 = vadd.f32 %v308, %v311
        %v315 = vsel %vm286, %v279, 0
        %v318 = vsel %vm286, %v313, 0
        %320 = vmatpush.xpose.msra.mxu0 0.0
        %321 = vmatpush.xpose.msra.mxu0 0.0
        %322 = vmatpush.xpose.msra.mxu0 0.0
        %323 = vmatpush.xpose.msra.mxu0 0.0
        %324 = vmatpush.xpose.msra.mxu0 0.0
        %325 = vmatpush.xpose.msra.mxu0 0.0
        %326 = vmatpush.xpose.msra.mxu0 0.0
        %327 = vmatpush.xpose.msra.mxu0 0.0
        %328 = vmatpush.xpose.msra.mxu0 0.0
        %329 = vmatpush.xpose.msra.mxu0 0.0
        %330 = vmatpush.xpose.msra.mxu0 0.0
        %331 = vmatpush.xpose.msra.mxu0 0.0
        %332 = vmatpush.xpose.msra.mxu0 0.0
        %333 = vmatpush.xpose.msra.mxu0 0.0
        %334 = vmatpush.xpose.msra.mxu0 0.0
        %335 = vmatpush.xpose.msra.mxu0 %v318
        %336 = vmatmul.f32.gmra.mxu0 %v315
        %v337 = vpop.f32.mrf.mxu0
        %v338 = vadd.f32 0.0, %v337
        %339 = vdwg.mxu0
        %s340 = sld [smem:[#allocation3 + %s33]]
        %v341 = vstv %s340
        %v342 = vlaneseq
        %v343 = vand.u32 %v342, 127
        %vm344 = vcmp.lt.s32.totalorder %v343, %v341
        %v345 = vsel %vm344, 1, 0
        %v346 = vcvt.s32.f32 %v345
        %v347 = vmul.f32 %v338, %v346
        %vm348 = vcmask 64512
        %v349 = vsel %vm348, %v347, -inf
        %350 = vmax.xlane.f32.xlu0 %v349
        %v351 = vpop.xlane.xlu0 %350
        %v352 = vsub.f32 %v347, %v351
        %v353 = vmul.f32 %v352, 1.442695
        %v354 = vpow.pop %v353
        %v355 = vsel %vm348, %v354, 0.0
        %356 = vadd.xlane.f32.xlu0 %v355
        %v357 = vpop.xlane.xlu0 %356
        %v358 = vrcp.pop %v357
        %v359 = vmul.f32 %v357, %v358
        %v360 = vsub.f32 1.0, %v359
        %v361 = vmul.f32 %v358, %v360
        %v362 = vadd.f32 %v358, %v361
        %vm363 = vweird.f32 %v357
        %vm364 = vweird.f32 %v358
        %vm365 = vmor %vm363, %vm364
        %v366 = vsel %vm365, %v358, %v362
        %v367 = vand.u32 2147483647, %v357
        %vm368 = vcmp.eq.f32.partialorder %v367, 8.507059e+37
        %v369 = vand.u32 %v357, 2147483648
        %v370 = vor.u32 1.1754944e-38, %v369
        %v371 = vsel %vm368, %v370, %v366
        %v372 = vmul.f32 %v354, %v371
        %v373 = vmul.f32 %v372, %v346
        %v374 = vsel %vm348, %v373, 0.0
        %375 = vadd.xlane.f32.xlu0 %v374
        %v376 = vpop.xlane.xlu0 %375
        %v377 = vadd.f32 %v376, 1e-13
        %v378 = vrcp.pop %v377
        %v379 = vmul.f32 %v377, %v378
        %v380 = vsub.f32 1.0, %v379
        %v381 = vmul.f32 %v378, %v380
        %v382 = vadd.f32 %v378, %v381
        %vm383 = vweird.f32 %v377
        %vm384 = vweird.f32 %v378
        %vm385 = vmor %vm383, %vm384
        %v386 = vsel %vm385, %v378, %v382
        %v387 = vand.u32 2147483647, %v377
        %vm388 = vcmp.eq.f32.partialorder %v387, 8.507059e+37
        %v389 = vand.u32 %v377, 2147483648
        %v390 = vor.u32 1.1754944e-38, %v389
        %v391 = vsel %vm388, %v390, %v386
        %v392 = vmul.f32 %v373, %v391
        %v394 = vsel %vm348, %v392, 0
        %396 = vmatpush.msra.mxu0 0.0
        %397 = vmatpush.msra.mxu0 0.0
        %398 = vmatpush.msra.mxu0 0.0
        %399 = vmatpush.msra.mxu0 0.0
        %400 = vmatpush.msra.mxu0 0.0
        %401 = vmatpush.msra.mxu0 0.0
        %402 = vmatpush.msra.mxu0 0.0
        %403 = vmatpush.msra.mxu0 0.0
        %404 = vmatpush.msra.mxu0 0.0
        %405 = vmatpush.msra.mxu0 0.0
        %406 = vmatpush.msra.mxu0 0.0
        %407 = vmatpush.msra.mxu0 0.0
        %408 = vmatpush.msra.mxu0 0.0
        %409 = vmatpush.msra.mxu0 0.0
        %410 = vmatpush.msra.mxu0 0.0
        %411 = vmatpush.msra.mxu0 %v280
        %412 = vmatmul.f32.gmra.mxu0 %v394
        %v413 = vpop.f32.mrf.mxu0
        %v414 = vadd.f32 0.0, %v413
        %415 = vdwg.mxu0
        %v417 = vsel %vm286, %v414, 0
        %419 = vmatpush.msra.mxu0 0.0
        %420 = vmatpush.msra.mxu0 0.0
        %421 = vmatpush.msra.mxu0 0.0
        %422 = vmatpush.msra.mxu0 0.0
        %423 = vmatpush.msra.mxu0 0.0
        %424 = vmatpush.msra.mxu0 0.0
        %425 = vmatpush.msra.mxu0 0.0
        %426 = vmatpush.msra.mxu0 0.0
        %427 = vmatpush.msra.mxu0 0.0
        %428 = vmatpush.msra.mxu0 0.0
        %429 = vmatpush.msra.mxu0 0.0
        %430 = vmatpush.msra.mxu0 0.0
        %431 = vmatpush.msra.mxu0 %v284
        %432 = vmatpush.msra.mxu0 %v283
        %433 = vmatpush.msra.mxu0 %v282
        %434 = vmatpush.msra.mxu0 %v281
        %435 = vmatmul.f32.gmra.mxu0 %v417
        %v436 = vpop.f32.mrf.mxu0
        %v437 = vadd.f32 0.0, %v436
        %438 = vdwg.mxu0
        %v439 = vadd.f32 %v437, %v311
        %v440 = vmax.f32 %v439, 0.0
        %441 = vst.msk [vmem:[%s278] sm:$0xff] %vm286, %v440
        %s442 = sand.u32 %s135, 1
        %s443 = scalar_lea.sflag [#allocation6], %s442
        %s444 = sand.u32 %s135, 1
        %s445 = smul.addr %s444, 8
        %s446 = scalar_lea.vmem [#allocation10], %s445
        // Predicated region
        $region49: #{tpu_custom_call.1} parent=35 // pred_check
          %p447 = pneg %p145
        $region50: #{tpu_custom_call.1} parent=35 // pred_check_branch
          %449 = sbr.rel (%p447) target = $region52
        $region51: #{tpu_custom_call.1} parent=35 // pred_region
          %451 = vsyncadd %s443, 0
          %s452 = smul.addr %s33, 8
          %s453 = scalar_lea.hbm %s5, %s452
          %s455 = sshll.u32 %s446, 4
          %s456 = int_to_ptr.vmem [resolvable:$true] %s455
          %s457 = sshll.u32 %s453, 4
          %s458 = int_to_ptr.hbm [resolvable:$true] %s457
          %460 = dma.vmem_to_hbm [thread:$0]  %s456, 128, %s458, %s443
        $region52: #{tpu_custom_call.1} parent=35 // pred_fallthru
          _
      $region36: #{tpu_custom_call.1} parent=5 // pred_fallthru
        _
      %p461 = scmp.le.s32.totalorder 2, %s28
      // Predicated region
      $region53: #{tpu_custom_call.1} parent=5 // pred_check
        %p462 = pneg %p461
      $region54: #{tpu_custom_call.1} parent=5 // pred_check_branch
        %464 = sbr.rel (%p462) target = $region56
      $region55: #{tpu_custom_call.1} parent=5 // pred_region
        %s465 = ssub.s32 %s28, 2
        // Predicated region
        $region57: #{tpu_custom_call.1} parent=55 // pred_check
          %p466 = pneg %p151
        $region58: #{tpu_custom_call.1} parent=55 // pred_check_branch
          %468 = sbr.rel (%p466) target = $region60
        $region59: #{tpu_custom_call.1} parent=55 // pred_region
          %s469 = sand.u32 %s136, 1
          %s470 = scalar_lea.sflag [#allocation6], %s469
          %s471 = sand.u32 %s136, 1
          %s472 = smul.addr %s471, 8
          %s473 = scalar_lea.vmem [#allocation10], %s472
          %475 = dma.done %s470, 128
        $region60: #{tpu_custom_call.1} parent=55 // pred_fallthru
          _
      $region56: #{tpu_custom_call.1} parent=5 // pred_fallthru
        _
    $region6: #{tpu_custom_call.1} parent=1 // loop_footer
      %s32 = sadd.s32 1, %s28
    $region7: #{tpu_custom_call.1} parent=1 // loop_footer_branch
      %27 = sbr.rel target = $region3
    $region8: #{tpu_custom_call.1} parent=1 // loop_exit
      _
    %476 = vsyncpa [#allocation5], 1
    %s477 = scalar_lea.sflag [#allocation5], 1
    %478 = vsyncpa %s477, 1
    %479 = vsyncpa [#allocation8], 1
    %s480 = scalar_lea.sflag [#allocation8], 1
    %481 = vsyncpa %s480, 1
    %482 = vsyncpa [#allocation6], 1
    %s483 = scalar_lea.sflag [#allocation6], 1
    %484 = vsyncpa %s483, 1

</llo_original>
